<compile_context>
chip_gen: v5e
topology: v5e:2x2
jax: 0.10.0
libtpu: 0.0.40
codegen_flags: <defaults>
</compile_context>

<pallas_src>
import functools

import jax
import jax.numpy as jnp
from jax.experimental import pallas as pl
from jax.experimental.pallas import tpu as pltpu


def _conv_stats_kernel(x_ref, wbd_ref, y_ref, psum_ref, psq_ref,
                       *, H, W, Cin, KH, KW):
    """Conv (per-tap block-diagonal matmuls) + BN partial stats for one image.

    x_ref   : (1, Hp, Wp*Cin)        padded input image (compute dtype)
    wbd_ref : (KH*KW, W*Cin, W*Cout) block-diagonal per-tap weights (resident)
    y_ref   : (1, H, W*Cout)         conv output tile (f32 or bf16)
    psum_ref: (1, 1, W*Cout)         per-image column sums (over H)
    psq_ref : (1, 1, W*Cout)         per-image column sums of squares (over H)
    """
    WCin = W * Cin
    acc = None
    for t in range(KH * KW):
        dh, dw = divmod(t, KW)
        # (H, W*Cin) window for this tap; contiguous lane span starting dw*Cin.
        xs = x_ref[0, dh:dh + H, dw * Cin: dw * Cin + WCin]
        contrib = jnp.dot(xs, wbd_ref[t], preferred_element_type=jnp.float32)
        acc = contrib if acc is None else acc + contrib
    # BN partial statistics from the f32 accumulator (per (w, c) column;
    # the tiny finalize reduces over images and over w).
    psum_ref[...] = jnp.sum(acc, axis=0, keepdims=True)[None]
    psq_ref[...] = jnp.sum(acc * acc, axis=0, keepdims=True)[None]
    y_ref[...] = acc[None].astype(y_ref.dtype)


def _bn_apply_kernel(y_ref, scale_ref, shift_ref, o_ref):
    """Lane-dense BatchNorm apply: one FMA per element on the (rows, W*Cout) view."""
    o_ref[...] = (y_ref[...].astype(jnp.float32) * scale_ref[...]
                  + shift_ref[...]).astype(o_ref.dtype)


def cnn_layer_forward(x_nchw, w_oihw, bias, gamma, beta, *, eps=1e-5,
                      compute_dtype=jnp.bfloat16, tr=None):
    """Matches CNN_layer.forward for a module in its default (training) state."""
    del bias  # conv bias is exactly cancelled by training-mode BN mean subtraction
    N, Cin, H, W = x_nchw.shape
    Cout, Cin_w, KH, KW = w_oihw.shape
    assert Cin_w == Cin and KH % 2 == 1 and KW % 2 == 1
    ph, pw = (KH - 1) // 2, (KW - 1) // 2
    Hp, Wp = H + 2 * ph, W + 2 * pw
    NHW = N * H * W
    WC = W * Cout
    WCin = W * Cin

    is_bf16 = jnp.dtype(compute_dtype) == jnp.dtype(jnp.bfloat16)
    y_dtype = jnp.bfloat16 if is_bf16 else jnp.float32

    # ---- plain-JAX glue: layout plumbing only (no im2col materialization) ---
    x_nhwc = jnp.transpose(x_nchw, (0, 2, 3, 1))
    x_pad = jnp.pad(x_nhwc, ((0, 0), (ph, ph), (pw, pw), (0, 0)))
    x2 = x_pad.reshape(N, Hp, Wp * Cin).astype(compute_dtype)   # dense in HBM

    # Per-tap block-diagonal weights: wbd[t, u*Cin+i, v*Cout+o] = [u==v]*w[o,i,dh,dw]
    w_taps = jnp.transpose(w_oihw, (2, 3, 1, 0)).reshape(KH * KW, Cin, Cout)
    eye_w = jnp.eye(W, dtype=w_taps.dtype)
    wbd = jnp.einsum('uv,tio->tuivo', eye_w, w_taps).reshape(KH * KW, WCin, WC)
    wbd = wbd.astype(compute_dtype)                              # tiny, VMEM-resident

    # ---- kernel 1: conv + per-image BN partial sums (grid over images) ------
    # N >= 2 gives >= 2 "parallel" tiles so both v7x TensorCores run.
    kernel1 = functools.partial(_conv_stats_kernel, H=H, W=W, Cin=Cin,
                                KH=KH, KW=KW)
    y3, psum, psq = pl.pallas_call(
        kernel1,
        out_shape=(
            jax.ShapeDtypeStruct((N, H, WC), y_dtype),
            jax.ShapeDtypeStruct((N, 1, WC), jnp.float32),
            jax.ShapeDtypeStruct((N, 1, WC), jnp.float32),
        ),
        grid_spec=pltpu.PrefetchScalarGridSpec(
            num_scalar_prefetch=0,
            grid=(N,),
            in_specs=[
                pl.BlockSpec((1, Hp, Wp * Cin), lambda n: (n, 0, 0)),
                pl.BlockSpec((KH * KW, WCin, WC), lambda n: (0, 0, 0)),  # resident
            ],
            out_specs=[
                pl.BlockSpec((1, H, WC), lambda n: (n, 0, 0)),
                pl.BlockSpec((1, 1, WC), lambda n: (n, 0, 0)),
                pl.BlockSpec((1, 1, WC), lambda n: (n, 0, 0)),
            ],
        ),
        compiler_params=pltpu.CompilerParams(
            dimension_semantics=("parallel",)),
    )(x2, wbd)

    # ---- tiny finalize (O(Cout) work): biased var, scale/shift --------------
    s = jnp.sum(psum.reshape(N, W, Cout), axis=(0, 1))
    ss = jnp.sum(psq.reshape(N, W, Cout), axis=(0, 1))
    mean = s / NHW
    var = jnp.maximum(ss / NHW - mean * mean, 0.0)               # biased variance
    scale = gamma.astype(jnp.float32) * jax.lax.rsqrt(var + eps)
    shift = beta.astype(jnp.float32) - mean * scale

    # ---- kernel 2: lane-dense BN apply on the (N*H, W*Cout) view ------------
    NH = N * H
    y2 = y3.reshape(NH, WC)                    # free reshape (contiguous buffer)
    scale_t = jnp.tile(scale, W).reshape(1, WC)
    shift_t = jnp.tile(shift, W).reshape(1, WC)

    if tr is None:
        tr = NH if NH <= 2048 else 2048
    tr = min(tr, NH)
    if tr != NH:
        mult = 16 if y_dtype == jnp.bfloat16 else 8
        tr = max(mult, (tr // mult) * mult)
    r_tiles = pl.cdiv(NH, tr)

    out2 = pl.pallas_call(
        _bn_apply_kernel,
        out_shape=jax.ShapeDtypeStruct((NH, WC), x_nchw.dtype),
        grid_spec=pltpu.PrefetchScalarGridSpec(
            num_scalar_prefetch=0,
            grid=(r_tiles,),
            in_specs=[
                pl.BlockSpec((tr, WC), lambda r: (r, 0)),
                pl.BlockSpec((1, WC), lambda r: (0, 0)),
                pl.BlockSpec((1, WC), lambda r: (0, 0)),
            ],
            out_specs=pl.BlockSpec((tr, WC), lambda r: (r, 0)),
        ),
        compiler_params=pltpu.CompilerParams(
            dimension_semantics=("parallel",)),
    )(y2, scale_t, shift_t)

    out_nhwc = out2.reshape(N, H, W, Cout)
    # NHWC -> NCHW left to XLA (tiny output; in-kernel (H*W,Cout) transpose with
    # a <128-lane minor dim is a lowering risk not worth taking here).
    return jnp.transpose(out_nhwc, (0, 3, 1, 2))


def _reference_forward(x_nchw, w_oihw, bias, gamma, beta, eps=1e-5):
    """Pure-JAX reference (conv + training-mode BN), for validation."""
    Cout, Cin, KH, KW = w_oihw.shape
    ph, pw = (KH - 1) // 2, (KW - 1) // 2
    y = jax.lax.conv_general_dilated(
        x_nchw, w_oihw, window_strides=(1, 1),
        padding=[(ph, ph), (pw, pw)],
        dimension_numbers=("NCHW", "OIHW", "NCHW"))
    y = y + bias[None, :, None, None]
    mean = jnp.mean(y, axis=(0, 2, 3), keepdims=True)
    var = jnp.mean((y - mean) ** 2, axis=(0, 2, 3), keepdims=True)
    return (gamma[None, :, None, None] * (y - mean) * jax.lax.rsqrt(var + eps)
            + beta[None, :, None, None])


if __name__ == "__main__":
    # Small shapes consistent with the module: batch=2, in_ch=4, out_ch=8,
    # spatial 16x16, kernel (3, 3), dropout=0.1 (identity here).
    N, Cin, Cout, H, W = 2, 4, 8, 16, 16
    KH, KW = 3, 3

    key = jax.random.PRNGKey(0)
    kx, kw, kb = jax.random.split(key, 3)
    x = jax.random.normal(kx, (N, Cin, H, W), jnp.float32)
    fan_in = Cin * KH * KW
    w = jax.random.normal(kw, (Cout, Cin, KH, KW), jnp.float32) / jnp.sqrt(fan_in)
    b = 0.1 * jax.random.normal(kb, (Cout,), jnp.float32)
    gamma = jnp.ones((Cout,), jnp.float32)     # BatchNorm2d default init
    beta = jnp.zeros((Cout,), jnp.float32)

    ref = jax.block_until_ready(_reference_forward(x, w, b, gamma, beta))

    # f32 compute path: exact semantics.
    out_f32 = jax.block_until_ready(
        cnn_layer_forward(x, w, b, gamma, beta, compute_dtype=jnp.float32))
    assert out_f32.shape == (N, Cout, H, W), out_f32.shape
    assert jnp.allclose(out_f32, ref, atol=1e-4, rtol=1e-4), (
        float(jnp.max(jnp.abs(out_f32 - ref))))

    # f32 compute path, forced multi-tile BN apply (exercises the tiled grid).
    out_tiled = jax.block_until_ready(
        cnn_layer_forward(x, w, b, gamma, beta, compute_dtype=jnp.float32, tr=8))
    assert jnp.allclose(out_tiled, ref, atol=1e-4, rtol=1e-4), (
        float(jnp.max(jnp.abs(out_tiled - ref))))

    # Default bandwidth-optimized path: bf16 MXU inputs + bf16 intermediate,
    # f32 accumulation and f32 BN statistics.
    out_bf16 = jax.block_until_ready(cnn_layer_forward(x, w, b, gamma, beta))
    assert out_bf16.shape == (N, Cout, H, W), out_bf16.shape
    assert jnp.allclose(out_bf16, ref, atol=5e-2, rtol=5e-2), (
        float(jnp.max(jnp.abs(out_bf16 - ref))))

    print("KERNEL_OK")
</pallas_src>

<mosaic_0001>
module attributes {stable_mosaic.version = 11 : i64} {
  func.func @_conv_stats_kernel(%arg0: i32, %arg1: memref<1x18x72xf32, #tpu.memory_space<vmem>>, %arg2: memref<9x64x128xf32, #tpu.memory_space<vmem>>, %arg3: memref<1x16x128xf32, #tpu.memory_space<vmem>>, %arg4: memref<1x1x128xf32, #tpu.memory_space<vmem>>, %arg5: memref<1x1x128xf32, #tpu.memory_space<vmem>>) attributes {dimension_semantics = [#tpu.dimension_semantics<parallel>], iteration_bounds = array<i64: 2>, scalar_prefetch = 0 : i64, scratch_operands = 0 : i64, tpu.core_type = #tpu.core_type<tc>, window_params = [{transform_indices = @transform_0, window_bounds = array<i64: 1, 18, 72>}, {pipeline_mode = #tpu.pipeline_mode<synchronous>, transform_indices = @transform_1, window_bounds = array<i64: 9, 64, 128>}, {transform_indices = @transform_2, window_bounds = array<i64: 1, 16, 128>}, {transform_indices = @transform_3, window_bounds = array<i64: 1, 1, 128>}, {transform_indices = @transform_4, window_bounds = array<i64: 1, 1, 128>}]} {
    %c0 = arith.constant 0 : index
    %c0_0 = arith.constant 0 : index
    %c0_1 = arith.constant 0 : index
    %0 = vector.load %arg1[%c0, %c0_0, %c0_1] : memref<1x18x72xf32, #tpu.memory_space<vmem>>, vector<1x16x64xf32>
    %1 = vector.shape_cast %0 : vector<1x16x64xf32> to vector<16x64xf32>
    %c0_2 = arith.constant 0 : index
    %c0_3 = arith.constant 0 : index
    %c0_4 = arith.constant 0 : index
    %2 = vector.load %arg2[%c0_2, %c0_3, %c0_4] : memref<9x64x128xf32, #tpu.memory_space<vmem>>, vector<1x64x128xf32>
    %3 = vector.shape_cast %2 : vector<1x64x128xf32> to vector<64x128xf32>
    %cst = arith.constant dense<0.000000e+00> : vector<16x128xf32>
    %4 = tpu.matmul %1, %3, %cst {dimension_numbers = #tpu.dot_dimension_numbers<[1], [0], [0], [1], [0, 0, 1, 1], [], []>} : vector<16x64xf32>, vector<64x128xf32>, vector<16x128xf32> -> vector<16x128xf32>
    %c0_5 = arith.constant 0 : index
    %c0_6 = arith.constant 0 : index
    %c4 = arith.constant 4 : index
    %5 = vector.load %arg1[%c0_5, %c0_6, %c4] : memref<1x18x72xf32, #tpu.memory_space<vmem>>, vector<1x16x64xf32>
    %6 = vector.shape_cast %5 : vector<1x16x64xf32> to vector<16x64xf32>
    %c1 = arith.constant 1 : index
    %c0_7 = arith.constant 0 : index
    %c0_8 = arith.constant 0 : index
    %7 = vector.load %arg2[%c1, %c0_7, %c0_8] : memref<9x64x128xf32, #tpu.memory_space<vmem>>, vector<1x64x128xf32>
    %8 = vector.shape_cast %7 : vector<1x64x128xf32> to vector<64x128xf32>
    %cst_9 = arith.constant dense<0.000000e+00> : vector<16x128xf32>
    %9 = tpu.matmul %6, %8, %cst_9 {dimension_numbers = #tpu.dot_dimension_numbers<[1], [0], [0], [1], [0, 0, 1, 1], [], []>} : vector<16x64xf32>, vector<64x128xf32>, vector<16x128xf32> -> vector<16x128xf32>
    %10 = arith.addf %4, %9 : vector<16x128xf32>
    %c0_10 = arith.constant 0 : index
    %c0_11 = arith.constant 0 : index
    %c8 = arith.constant 8 : index
    %11 = vector.load %arg1[%c0_10, %c0_11, %c8] : memref<1x18x72xf32, #tpu.memory_space<vmem>>, vector<1x16x64xf32>
    %12 = vector.shape_cast %11 : vector<1x16x64xf32> to vector<16x64xf32>
    %c2 = arith.constant 2 : index
    %c0_12 = arith.constant 0 : index
    %c0_13 = arith.constant 0 : index
    %13 = vector.load %arg2[%c2, %c0_12, %c0_13] : memref<9x64x128xf32, #tpu.memory_space<vmem>>, vector<1x64x128xf32>
    %14 = vector.shape_cast %13 : vector<1x64x128xf32> to vector<64x128xf32>
    %cst_14 = arith.constant dense<0.000000e+00> : vector<16x128xf32>
    %15 = tpu.matmul %12, %14, %cst_14 {dimension_numbers = #tpu.dot_dimension_numbers<[1], [0], [0], [1], [0, 0, 1, 1], [], []>} : vector<16x64xf32>, vector<64x128xf32>, vector<16x128xf32> -> vector<16x128xf32>
    %16 = arith.addf %10, %15 : vector<16x128xf32>
    %c0_15 = arith.constant 0 : index
    %c1_16 = arith.constant 1 : index
    %c0_17 = arith.constant 0 : index
    %17 = vector.load %arg1[%c0_15, %c1_16, %c0_17] : memref<1x18x72xf32, #tpu.memory_space<vmem>>, vector<1x16x64xf32>
    %18 = vector.shape_cast %17 : vector<1x16x64xf32> to vector<16x64xf32>
    %c3 = arith.constant 3 : index
    %c0_18 = arith.constant 0 : index
    %c0_19 = arith.constant 0 : index
    %19 = vector.load %arg2[%c3, %c0_18, %c0_19] : memref<9x64x128xf32, #tpu.memory_space<vmem>>, vector<1x64x128xf32>
    %20 = vector.shape_cast %19 : vector<1x64x128xf32> to vector<64x128xf32>
    %cst_20 = arith.constant dense<0.000000e+00> : vector<16x128xf32>
    %21 = tpu.matmul %18, %20, %cst_20 {dimension_numbers = #tpu.dot_dimension_numbers<[1], [0], [0], [1], [0, 0, 1, 1], [], []>} : vector<16x64xf32>, vector<64x128xf32>, vector<16x128xf32> -> vector<16x128xf32>
    %22 = arith.addf %16, %21 : vector<16x128xf32>
    %c0_21 = arith.constant 0 : index
    %c1_22 = arith.constant 1 : index
    %c4_23 = arith.constant 4 : index
    %23 = vector.load %arg1[%c0_21, %c1_22, %c4_23] : memref<1x18x72xf32, #tpu.memory_space<vmem>>, vector<1x16x64xf32>
    %24 = vector.shape_cast %23 : vector<1x16x64xf32> to vector<16x64xf32>
    %c4_24 = arith.constant 4 : index
    %c0_25 = arith.constant 0 : index
    %c0_26 = arith.constant 0 : index
    %25 = vector.load %arg2[%c4_24, %c0_25, %c0_26] : memref<9x64x128xf32, #tpu.memory_space<vmem>>, vector<1x64x128xf32>
    %26 = vector.shape_cast %25 : vector<1x64x128xf32> to vector<64x128xf32>
    %cst_27 = arith.constant dense<0.000000e+00> : vector<16x128xf32>
    %27 = tpu.matmul %24, %26, %cst_27 {dimension_numbers = #tpu.dot_dimension_numbers<[1], [0], [0], [1], [0, 0, 1, 1], [], []>} : vector<16x64xf32>, vector<64x128xf32>, vector<16x128xf32> -> vector<16x128xf32>
    %28 = arith.addf %22, %27 : vector<16x128xf32>
    %c0_28 = arith.constant 0 : index
    %c1_29 = arith.constant 1 : index
    %c8_30 = arith.constant 8 : index
    %29 = vector.load %arg1[%c0_28, %c1_29, %c8_30] : memref<1x18x72xf32, #tpu.memory_space<vmem>>, vector<1x16x64xf32>
    %30 = vector.shape_cast %29 : vector<1x16x64xf32> to vector<16x64xf32>
    %c5 = arith.constant 5 : index
    %c0_31 = arith.constant 0 : index
    %c0_32 = arith.constant 0 : index
    %31 = vector.load %arg2[%c5, %c0_31, %c0_32] : memref<9x64x128xf32, #tpu.memory_space<vmem>>, vector<1x64x128xf32>
    %32 = vector.shape_cast %31 : vector<1x64x128xf32> to vector<64x128xf32>
    %cst_33 = arith.constant dense<0.000000e+00> : vector<16x128xf32>
    %33 = tpu.matmul %30, %32, %cst_33 {dimension_numbers = #tpu.dot_dimension_numbers<[1], [0], [0], [1], [0, 0, 1, 1], [], []>} : vector<16x64xf32>, vector<64x128xf32>, vector<16x128xf32> -> vector<16x128xf32>
    %34 = arith.addf %28, %33 : vector<16x128xf32>
    %c0_34 = arith.constant 0 : index
    %c2_35 = arith.constant 2 : index
    %c0_36 = arith.constant 0 : index
    %35 = vector.load %arg1[%c0_34, %c2_35, %c0_36] : memref<1x18x72xf32, #tpu.memory_space<vmem>>, vector<1x16x64xf32>
    %36 = vector.shape_cast %35 : vector<1x16x64xf32> to vector<16x64xf32>
    %c6 = arith.constant 6 : index
    %c0_37 = arith.constant 0 : index
    %c0_38 = arith.constant 0 : index
    %37 = vector.load %arg2[%c6, %c0_37, %c0_38] : memref<9x64x128xf32, #tpu.memory_space<vmem>>, vector<1x64x128xf32>
    %38 = vector.shape_cast %37 : vector<1x64x128xf32> to vector<64x128xf32>
    %cst_39 = arith.constant dense<0.000000e+00> : vector<16x128xf32>
    %39 = tpu.matmul %36, %38, %cst_39 {dimension_numbers = #tpu.dot_dimension_numbers<[1], [0], [0], [1], [0, 0, 1, 1], [], []>} : vector<16x64xf32>, vector<64x128xf32>, vector<16x128xf32> -> vector<16x128xf32>
    %40 = arith.addf %34, %39 : vector<16x128xf32>
    %c0_40 = arith.constant 0 : index
    %c2_41 = arith.constant 2 : index
    %c4_42 = arith.constant 4 : index
    %41 = vector.load %arg1[%c0_40, %c2_41, %c4_42] : memref<1x18x72xf32, #tpu.memory_space<vmem>>, vector<1x16x64xf32>
    %42 = vector.shape_cast %41 : vector<1x16x64xf32> to vector<16x64xf32>
    %c7 = arith.constant 7 : index
    %c0_43 = arith.constant 0 : index
    %c0_44 = arith.constant 0 : index
    %43 = vector.load %arg2[%c7, %c0_43, %c0_44] : memref<9x64x128xf32, #tpu.memory_space<vmem>>, vector<1x64x128xf32>
    %44 = vector.shape_cast %43 : vector<1x64x128xf32> to vector<64x128xf32>
    %cst_45 = arith.constant dense<0.000000e+00> : vector<16x128xf32>
    %45 = tpu.matmul %42, %44, %cst_45 {dimension_numbers = #tpu.dot_dimension_numbers<[1], [0], [0], [1], [0, 0, 1, 1], [], []>} : vector<16x64xf32>, vector<64x128xf32>, vector<16x128xf32> -> vector<16x128xf32>
    %46 = arith.addf %40, %45 : vector<16x128xf32>
    %c0_46 = arith.constant 0 : index
    %c2_47 = arith.constant 2 : index
    %c8_48 = arith.constant 8 : index
    %47 = vector.load %arg1[%c0_46, %c2_47, %c8_48] : memref<1x18x72xf32, #tpu.memory_space<vmem>>, vector<1x16x64xf32>
    %48 = vector.shape_cast %47 : vector<1x16x64xf32> to vector<16x64xf32>
    %c8_49 = arith.constant 8 : index
    %c0_50 = arith.constant 0 : index
    %c0_51 = arith.constant 0 : index
    %49 = vector.load %arg2[%c8_49, %c0_50, %c0_51] : memref<9x64x128xf32, #tpu.memory_space<vmem>>, vector<1x64x128xf32>
    %50 = vector.shape_cast %49 : vector<1x64x128xf32> to vector<64x128xf32>
    %cst_52 = arith.constant dense<0.000000e+00> : vector<16x128xf32>
    %51 = tpu.matmul %48, %50, %cst_52 {dimension_numbers = #tpu.dot_dimension_numbers<[1], [0], [0], [1], [0, 0, 1, 1], [], []>} : vector<16x64xf32>, vector<64x128xf32>, vector<16x128xf32> -> vector<16x128xf32>
    %52 = arith.addf %46, %51 : vector<16x128xf32>
    %cst_53 = arith.constant dense<0.000000e+00> : vector<128xf32>
    %53 = vector.multi_reduction <add>, %52, %cst_53 [0] : vector<16x128xf32> to vector<128xf32>
    %54 = vector.shape_cast %53 : vector<128xf32> to vector<1x128xf32>
    %55 = vector.shape_cast %54 : vector<1x128xf32> to vector<1x1x128xf32>
    %c0_54 = arith.constant 0 : index
    %c0_55 = arith.constant 0 : index
    %c0_56 = arith.constant 0 : index
    %56 = vector.load %arg4[%c0_54, %c0_55, %c0_56] : memref<1x1x128xf32, #tpu.memory_space<vmem>>, vector<1x1x128xf32>
    tpu.vector_store %arg4[%c0_54, %c0_55, %c0_56], %55 {strides = array<i32>} : memref<1x1x128xf32, #tpu.memory_space<vmem>>, vector<1x1x128xf32>,
    %57 = arith.mulf %52, %52 : vector<16x128xf32>
    %cst_57 = arith.constant dense<0.000000e+00> : vector<128xf32>
    %58 = vector.multi_reduction <add>, %57, %cst_57 [0] : vector<16x128xf32> to vector<128xf32>
    %59 = vector.shape_cast %58 : vector<128xf32> to vector<1x128xf32>
    %60 = vector.shape_cast %59 : vector<1x128xf32> to vector<1x1x128xf32>
    %c0_58 = arith.constant 0 : index
    %c0_59 = arith.constant 0 : index
    %c0_60 = arith.constant 0 : index
    %61 = vector.load %arg5[%c0_58, %c0_59, %c0_60] : memref<1x1x128xf32, #tpu.memory_space<vmem>>, vector<1x1x128xf32>
    tpu.vector_store %arg5[%c0_58, %c0_59, %c0_60], %60 {strides = array<i32>} : memref<1x1x128xf32, #tpu.memory_space<vmem>>, vector<1x1x128xf32>,
    %62 = vector.shape_cast %52 : vector<16x128xf32> to vector<1x16x128xf32>
    %c0_61 = arith.constant 0 : index
    %c0_62 = arith.constant 0 : index
    %c0_63 = arith.constant 0 : index
    %63 = vector.load %arg3[%c0_61, %c0_62, %c0_63] : memref<1x16x128xf32, #tpu.memory_space<vmem>>, vector<1x16x128xf32>
    tpu.vector_store %arg3[%c0_61, %c0_62, %c0_63], %62 {strides = array<i32>} : memref<1x16x128xf32, #tpu.memory_space<vmem>>, vector<1x16x128xf32>,
    return
  }
  func.func @transform_0(%arg0: i32) -> (i32, i32, i32) {
    %c0_i32 = arith.constant 0 : i32
    %c0_i32_0 = arith.constant 0 : i32
    %c0_i32_1 = arith.constant 0 : i32
    return %arg0, %c0_i32, %c0_i32_0 : i32, i32, i32
  }
  func.func @transform_1(%arg0: i32) -> (i32, i32, i32) {
    %c0_i32 = arith.constant 0 : i32
    %c0_i32_0 = arith.constant 0 : i32
    %c0_i32_1 = arith.constant 0 : i32
    %c0_i32_2 = arith.constant 0 : i32
    return %c0_i32, %c0_i32_0, %c0_i32_1 : i32, i32, i32
  }
  func.func @transform_2(%arg0: i32) -> (i32, i32, i32) {
    %c0_i32 = arith.constant 0 : i32
    %c0_i32_0 = arith.constant 0 : i32
    %c0_i32_1 = arith.constant 0 : i32
    return %arg0, %c0_i32, %c0_i32_0 : i32, i32, i32
  }
  func.func @transform_3(%arg0: i32) -> (i32, i32, i32) {
    %c0_i32 = arith.constant 0 : i32
    %c0_i32_0 = arith.constant 0 : i32
    %c0_i32_1 = arith.constant 0 : i32
    return %arg0, %c0_i32, %c0_i32_0 : i32, i32, i32
  }
  func.func @transform_4(%arg0: i32) -> (i32, i32, i32) {
    %c0_i32 = arith.constant 0 : i32
    %c0_i32_0 = arith.constant 0 : i32
    %c0_i32_1 = arith.constant 0 : i32
    return %arg0, %c0_i32, %c0_i32_0 : i32, i32, i32
  }
}

</mosaic_0001>

<llo_original>
// kernel: tpu_custom_call.1
$region0: #{tpu_custom_call.1}
  #allocation0 [shape = 'u32[]', space=smem, size = 0x4, offset = 0x4, fixed_abs, tag = 'smem constant byte address 0x4 - core index']
  #allocation1 [shape = 'u32[72,128]{1,0:T(1,128)}', space=vmem, size = 0x9000, scoped, tag = 'internal scratch']
  %s0 = inlined_call_operand.vmem [shape: f32[2,18,72], index: 0, kind: input, shape index: {}]
  %s1 = inlined_call_operand.hbm [shape: f32[9,64,128], index: 1, kind: input, shape index: {}]
  %s2 = inlined_call_operand.hbm [shape: f32[2,16,128], index: 2, kind: output, shape index: {0}]
  %s3 = inlined_call_operand.hbm [shape: f32[2,1,128], index: 3, kind: output, shape index: {1}]
  %s4 = inlined_call_operand.hbm [shape: f32[2,1,128], index: 4, kind: output, shape index: {2}]
  %5 = xla_tuple %s2, %s3, %s4
  %s6 = sld [smem:[#allocation0]]
  $region61: #{tpu_custom_call.1} parent=0
    _
  %s8 = ssub.s32 1, %s6
  %s9 = scalar_select 0, %s8, %s6
  $region1: #{tpu_custom_call.1} parent=0
    #allocation2 [shape = 'u8[294912]{0}', space=vmem, size = 0x48000, scoped, tag = 'input window, operand 1, single buffered']
    #allocation3 [shape = 's32[2]{0}', space=sflag, size = 0x8, scoped, tag = 'scoped memory for tpu_custom_call.1']
    #allocation4 [shape = 's32[2]{0}', space=sflag, size = 0x8, scoped, tag = 'scoped memory for tpu_custom_call.1']
    #allocation5 [shape = 'u8[16384]{0}', space=vmem, size = 0x4000, scoped, tag = 'output window, operand 0']
    #allocation6 [shape = 'u8[1024]{0}', space=vmem, size = 0x400, scoped, tag = 'output window, operand 1']
    #allocation7 [shape = 's32[2]{0}', space=sflag, size = 0x8, scoped, tag = 'scoped memory for tpu_custom_call.1']
    #allocation8 [shape = 'u8[1024]{0}', space=vmem, size = 0x400, scoped, tag = 'output window, operand 2']
    %10 = vsyncpa [#allocation3], 0
    %11 = vsyncpa [#allocation4], 0
    %s12 = scalar_lea.sflag [#allocation4], 1
    %13 = vsyncpa %s12, 0
    %14 = vsyncpa [#allocation7], 0
    %s15 = scalar_lea.sflag [#allocation7], 1
    %16 = vsyncpa %s15, 0
    loop: start=0, step=1, limit=4
    $region2: #{tpu_custom_call.1} parent=1 // loop_pre_header
      _
    $region3: #{tpu_custom_call.1} parent=1 // loop_header
      %s18 = sphi 0, %s22
      %p19 = scmp.ge.s32.totalorder %s18, 4
      %s28 = sphi 0, %s30
      %s31 = sphi 0, %s28
      %s32 = sphi 0, %s31
      %s48 = sphi 0, %s32
      %s52 = sphi 0, %s52
      %s54 = sphi 0, %s52
      %s55 = sphi 0, %s54
      %s69 = sphi 0, %s55
      %s75 = sphi 0, %s77
      %s78 = sphi 0, %s75
      %s79 = sphi 0, %s78
      %s95 = sphi 0, %s79
      %s101 = sphi 0, %s103
      %s104 = sphi 0, %s101
      %s105 = sphi 0, %s104
      %s121 = sphi 0, %s105
      %s127 = sphi 0, %s129
      %s130 = sphi 0, %s127
      %s131 = sphi 0, %s130
      %s147 = sphi 0, %s131
    $region4: #{tpu_custom_call.1} parent=1 // loop_header_branch
      %21 = sbr.rel (%p19) target = $region8
    $region5: #{tpu_custom_call.1} parent=1 // loop_body
      %s23 = ssub.s32 %s18, 1
      %s24 = ssub.s32 %s18, 2
      %s25 = sadd.s32 %s18, 1
      %s26 = ssub.s32 %s18, %s25
      %p27 = scmp.eq.s32.totalorder %s26, 0
      %s29 = sadd.s32 %s28, 1
      %s30 = scalar_select %p27, %s28, %s29
      %p33 = pneg %p27
      %p34 = scmp.eq.s32.totalorder %s18, 1
      %p35 = por %p33, %p34
      %p36 = scmp.ne.s32.totalorder %s28, %s31
      %p37 = scmp.eq.s32.totalorder %s18, 0
      %p38 = por %p36, %p37
      %p39 = scmp.ne.s32.totalorder %s28, %s31
      %p40 = scmp.eq.s32.totalorder %s23, 1
      %p41 = por %p39, %p40
      %p42 = scmp.ne.s32.totalorder %s31, %s32
      %p43 = scmp.eq.s32.totalorder %s23, 0
      %p44 = por %p42, %p43
      %p45 = scmp.ne.s32.totalorder %s31, %s32
      %p46 = scmp.eq.s32.totalorder %s24, 1
      %p47 = por %p45, %p46
      %p49 = scmp.ne.s32.totalorder %s32, %s48
      %p50 = scmp.eq.s32.totalorder %s24, 0
      %p51 = por %p49, %p50
      %s53 = sadd.s32 %s52, 1
      %p56 = scmp.eq.s32.totalorder %s18, 1
      %p57 = scmp.ne.s32.totalorder %s52, %s54
      %p58 = scmp.eq.s32.totalorder %s18, 0
      %p59 = por %p57, %p58
      %p60 = scmp.ne.s32.totalorder %s52, %s54
      %p61 = scmp.eq.s32.totalorder %s23, 1
      %p62 = por %p60, %p61
      %p63 = scmp.ne.s32.totalorder %s54, %s55
      %p64 = scmp.eq.s32.totalorder %s23, 0
      %p65 = por %p63, %p64
      %p66 = scmp.ne.s32.totalorder %s54, %s55
      %p67 = scmp.eq.s32.totalorder %s24, 1
      %p68 = por %p66, %p67
      %p70 = scmp.ne.s32.totalorder %s55, %s69
      %p71 = scmp.eq.s32.totalorder %s24, 0
      %p72 = por %p70, %p71
      %s73 = ssub.s32 %s18, %s25
      %p74 = scmp.eq.s32.totalorder %s73, 0
      %s76 = sadd.s32 %s75, 1
      %s77 = scalar_select %p74, %s75, %s76
      %p80 = pneg %p74
      %p81 = scmp.eq.s32.totalorder %s18, 1
      %p82 = por %p80, %p81
      %p83 = scmp.ne.s32.totalorder %s75, %s78
      %p84 = scmp.eq.s32.totalorder %s18, 0
      %p85 = por %p83, %p84
      %p86 = scmp.ne.s32.totalorder %s75, %s78
      %p87 = scmp.eq.s32.totalorder %s23, 1
      %p88 = por %p86, %p87
      %p89 = scmp.ne.s32.totalorder %s78, %s79
      %p90 = scmp.eq.s32.totalorder %s23, 0
      %p91 = por %p89, %p90
      %p92 = scmp.ne.s32.totalorder %s78, %s79
      %p93 = scmp.eq.s32.totalorder %s24, 1
      %p94 = por %p92, %p93
      %p96 = scmp.ne.s32.totalorder %s79, %s95
      %p97 = scmp.eq.s32.totalorder %s24, 0
      %p98 = por %p96, %p97
      %s99 = ssub.s32 %s18, %s25
      %p100 = scmp.eq.s32.totalorder %s99, 0
      %s102 = sadd.s32 %s101, 1
      %s103 = scalar_select %p100, %s101, %s102
      %p106 = pneg %p100
      %p107 = scmp.eq.s32.totalorder %s18, 1
      %p108 = por %p106, %p107
      %p109 = scmp.ne.s32.totalorder %s101, %s104
      %p110 = scmp.eq.s32.totalorder %s18, 0
      %p111 = por %p109, %p110
      %p112 = scmp.ne.s32.totalorder %s101, %s104
      %p113 = scmp.eq.s32.totalorder %s23, 1
      %p114 = por %p112, %p113
      %p115 = scmp.ne.s32.totalorder %s104, %s105
      %p116 = scmp.eq.s32.totalorder %s23, 0
      %p117 = por %p115, %p116
      %p118 = scmp.ne.s32.totalorder %s104, %s105
      %p119 = scmp.eq.s32.totalorder %s24, 1
      %p120 = por %p118, %p119
      %p122 = scmp.ne.s32.totalorder %s105, %s121
      %p123 = scmp.eq.s32.totalorder %s24, 0
      %p124 = por %p122, %p123
      %s125 = ssub.s32 %s18, %s25
      %p126 = scmp.eq.s32.totalorder %s125, 0
      %s128 = sadd.s32 %s127, 1
      %s129 = scalar_select %p126, %s127, %s128
      %p132 = pneg %p126
      %p133 = scmp.eq.s32.totalorder %s18, 1
      %p134 = por %p132, %p133
      %p135 = scmp.ne.s32.totalorder %s127, %s130
      %p136 = scmp.eq.s32.totalorder %s18, 0
      %p137 = por %p135, %p136
      %p138 = scmp.ne.s32.totalorder %s127, %s130
      %p139 = scmp.eq.s32.totalorder %s23, 1
      %p140 = por %p138, %p139
      %p141 = scmp.ne.s32.totalorder %s130, %s131
      %p142 = scmp.eq.s32.totalorder %s23, 0
      %p143 = por %p141, %p142
      %p144 = scmp.ne.s32.totalorder %s130, %s131
      %p145 = scmp.eq.s32.totalorder %s24, 1
      %p146 = por %p144, %p145
      %p148 = scmp.ne.s32.totalorder %s131, %s147
      %p149 = scmp.eq.s32.totalorder %s24, 0
      %p150 = por %p148, %p149
      %p151 = scmp.le.s32.totalorder 1, %s18
      %p152 = scmp.lt.s32.totalorder %s18, 3
      %p153 = pnand %p151, %p152
      %p154 = pneg %p153
      // Predicated region
      $region9: #{tpu_custom_call.1} parent=5 // pred_check
        _
      $region10: #{tpu_custom_call.1} parent=5 // pred_check_branch
        %156 = sbr.rel (%p153) target = $region12
      $region11: #{tpu_custom_call.1} parent=5 // pred_region
        %s157 = ssub.s32 %s18, 1
        // Predicated region
        $region13: #{tpu_custom_call.1} parent=11 // pred_check
          %p158 = pneg %p65
        $region14: #{tpu_custom_call.1} parent=11 // pred_check_branch
          %160 = sbr.rel (%p158) target = $region16
        $region15: #{tpu_custom_call.1} parent=11 // pred_region
          %162 = vsyncadd [#allocation3], 0
          %s163 = sshll.u32 %s1, 4
          %s164 = int_to_ptr.hbm [resolvable:$true] %s163
          %s165 = sshll.u32 [#allocation2], 4
          %s166 = int_to_ptr.vmem [resolvable:$true] %s165
          %171 = dma.hbm_to_vmem [thread:$0]  %s164, 9216, %s166, [#allocation3], 128, 128, 8
        $region16: #{tpu_custom_call.1} parent=11 // pred_fallthru
          _
      $region12: #{tpu_custom_call.1} parent=5 // pred_fallthru
        _
      %p172 = scmp.lt.s32.totalorder %s18, 2
      // Predicated region
      $region17: #{tpu_custom_call.1} parent=5 // pred_check
        %p173 = pneg %p172
      $region18: #{tpu_custom_call.1} parent=5 // pred_check_branch
        %175 = sbr.rel (%p173) target = $region20
      $region19: #{tpu_custom_call.1} parent=5 // pred_region
        // Predicated region
        $region21: #{tpu_custom_call.1} parent=19 // pred_check
          %p176 = pneg %p38
        $region22: #{tpu_custom_call.1} parent=19 // pred_check_branch
          %178 = sbr.rel (%p176) target = $region24
        $region23: #{tpu_custom_call.1} parent=19 // pred_region
          %p179 = scmp.lt.s32.totalorder %s18, 1
          %s180 = scalar_select %p179, %s18, 1
          %s181 = smul.addr %s180, 3
          %s182 = smul.addr %s181, 8
          %s183 = scalar_lea.vmem %s0, %s182
        $region24: #{tpu_custom_call.1} parent=19 // pred_fallthru
          _
      $region20: #{tpu_custom_call.1} parent=5 // pred_fallthru
        _
      %p184 = scmp.le.s32.totalorder 1, %s18
      %p185 = scmp.lt.s32.totalorder %s18, 3
      %p186 = pnand %p184, %p185
      %p187 = pneg %p186
      // Predicated region
      $region25: #{tpu_custom_call.1} parent=5 // pred_check
        _
      $region26: #{tpu_custom_call.1} parent=5 // pred_check_branch
        %189 = sbr.rel (%p186) target = $region28
      $region27: #{tpu_custom_call.1} parent=5 // pred_region
        %s190 = ssub.s32 %s18, 1
        // Predicated region
        $region29: #{tpu_custom_call.1} parent=27 // pred_check
          %p191 = pneg %p65
        $region30: #{tpu_custom_call.1} parent=27 // pred_check_branch
          %193 = sbr.rel (%p191) target = $region32
        $region31: #{tpu_custom_call.1} parent=27 // pred_region
          %195 = dma.done [#allocation3], 9216
        $region32: #{tpu_custom_call.1} parent=27 // pred_fallthru
          _
        %p196 = scmp.lt.s32.totalorder %s23, 1
        %s197 = scalar_select %p196, %s23, 1
        %s198 = smul.addr %s197, 3
        %s199 = smul.addr %s198, 8
        %s200 = scalar_lea.vmem %s0, %s199
        %p201 = pneg %p44
        %p202 = pneg %p41
        %p203 = pneg %p65
        %p204 = pneg %p62
        %p205 = pneg %p91
        %p206 = pneg %p88
        %s207 = sand.u32 %s78, 1
        %s208 = scalar_lea.sflag [#allocation4], %s207
        %s209 = sand.u32 %s78, 1
        %s210 = smul.addr %s209, 16
        %s211 = scalar_lea.vmem [#allocation5], %s210
        %p212 = pneg %p117
        %p213 = pneg %p114
        %s214 = sand.u32 %s23, 1
        %s215 = scalar_lea.sflag [#allocation7], %s214
        %s216 = sand.u32 %s104, 1
        %s217 = scalar_lea.vmem [#allocation6], %s216
        %p218 = pneg %p143
        %p219 = pneg %p140
        %s220 = sand.u32 %s23, 1
        %s221 = scalar_lea.sflag [#allocation7], %s220
        %s222 = sand.u32 %s130, 1
        %s223 = scalar_lea.vmem [#allocation8], %s222
        %p224 = scmp.lt.s32.totalorder %s23, 1
        %s225 = scalar_select %p224, %s23, 1
        %s226 = smul.addr %s225, 3
        %s227 = smul.addr %s226, 8
        %s228 = scalar_lea.vmem %s0, %s227
        %v229 = vld [vmem:[%s228] sm:$0xff]
        %v230 = vld [vmem:[%s228 + $0x8] sm:$0xff]
        %v231 = vld [vmem:[#allocation2] sm:$0xff]
        %v232 = vld [vmem:[#allocation2 + $0x8] sm:$0xff]
        %v233 = vld [vmem:[#allocation2 + $0x10] sm:$0xff]
        %v234 = vld [vmem:[#allocation2 + $0x18] sm:$0xff]
        %v235 = vld [vmem:[#allocation2 + $0x20] sm:$0xff]
        %v236 = vld [vmem:[#allocation2 + $0x28] sm:$0xff]
        %v237 = vld [vmem:[#allocation2 + $0x30] sm:$0xff]
        %v238 = vld [vmem:[#allocation2 + $0x38] sm:$0xff]
        %s239 = scalar_lea.vmem [#allocation2], 64
        %v240 = vld [vmem:[%s239] sm:$0xff]
        %v241 = vld [vmem:[%s239 + $0x8] sm:$0xff]
        %v242 = vld [vmem:[%s239 + $0x10] sm:$0xff]
        %v243 = vld [vmem:[%s239 + $0x18] sm:$0xff]
        %v244 = vld [vmem:[%s239 + $0x20] sm:$0xff]
        %v245 = vld [vmem:[%s239 + $0x28] sm:$0xff]
        %v246 = vld [vmem:[%s239 + $0x30] sm:$0xff]
        %v247 = vld [vmem:[%s239 + $0x38] sm:$0xff]
        %250 = vrot.lane.b32.xlu0 %v229, 124
        %v251 = vpop.permute.xlu0 %250
        %252 = vrot.lane.b32.xlu0 %v230, 124
        %v253 = vpop.permute.xlu0 %252
        %vm254 = vcmask 523264
        %v255 = vsel %vm254, %v251, 0
        %v257 = vsel %vm254, %v253, 0
        %259 = vmatpush.msra.mxu0 0.0
        %260 = vmatpush.msra.mxu0 0.0
        %261 = vmatpush.msra.mxu0 0.0
        %262 = vmatpush.msra.mxu0 0.0
        %263 = vmatpush.msra.mxu0 0.0
        %264 = vmatpush.msra.mxu0 0.0
        %265 = vmatpush.msra.mxu0 0.0
        %266 = vmatpush.msra.mxu0 0.0
        %267 = vmatpush.msra.mxu0 %v247
        %268 = vmatpush.msra.mxu0 %v246
        %269 = vmatpush.msra.mxu0 %v245
        %270 = vmatpush.msra.mxu0 %v244
        %271 = vmatpush.msra.mxu0 %v243
        %272 = vmatpush.msra.mxu0 %v242
        %273 = vmatpush.msra.mxu0 %v241
        %274 = vmatpush.msra.mxu0 %v240
        %275 = vmatmul.f32.gmra.mxu0 %v255
        %v276 = vpop.f32.mrf.mxu0
        %v277 = vadd.f32 0.0, %v276
        %278 = vmatmul.f32.gmra.mxu0 %v257
        %v279 = vpop.f32.mrf.mxu0
        %v280 = vadd.f32 0.0, %v279
        %281 = vdwg.mxu0
        %v282 = vsel %vm254, %v229, 0
        %v284 = vsel %vm254, %v230, 0
        %286 = vmatpush.msra.mxu0 0.0
        %287 = vmatpush.msra.mxu0 0.0
        %288 = vmatpush.msra.mxu0 0.0
        %289 = vmatpush.msra.mxu0 0.0
        %290 = vmatpush.msra.mxu0 0.0
        %291 = vmatpush.msra.mxu0 0.0
        %292 = vmatpush.msra.mxu0 0.0
        %293 = vmatpush.msra.mxu0 0.0
        %294 = vmatpush.msra.mxu0 %v238
        %295 = vmatpush.msra.mxu0 %v237
        %296 = vmatpush.msra.mxu0 %v236
        %297 = vmatpush.msra.mxu0 %v235
        %298 = vmatpush.msra.mxu0 %v234
        %299 = vmatpush.msra.mxu0 %v233
        %300 = vmatpush.msra.mxu0 %v232
        %301 = vmatpush.msra.mxu0 %v231
        %302 = vmatmul.f32.gmra.mxu0 %v282
        %v303 = vpop.f32.mrf.mxu0
        %v304 = vadd.f32 %v277, %v303
        %305 = vmatmul.f32.gmra.mxu0 %v284
        %v306 = vpop.f32.mrf.mxu0
        %v307 = vadd.f32 %v280, %v306
        %308 = vdwg.mxu0
        %s309 = scalar_lea.vmem [#allocation2], 128
        %v310 = vld [vmem:[%s309] sm:$0xff]
        %v311 = vld [vmem:[%s309 + $0x8] sm:$0xff]
        %v312 = vld [vmem:[%s309 + $0x10] sm:$0xff]
        %v313 = vld [vmem:[%s309 + $0x18] sm:$0xff]
        %v314 = vld [vmem:[%s309 + $0x20] sm:$0xff]
        %v315 = vld [vmem:[%s309 + $0x28] sm:$0xff]
        %v316 = vld [vmem:[%s309 + $0x30] sm:$0xff]
        %v317 = vld [vmem:[%s309 + $0x38] sm:$0xff]
        %318 = vrot.lane.b32.xlu0 %v229, 120
        %v319 = vpop.permute.xlu0 %318
        %320 = vrot.lane.b32.xlu0 %v230, 120
        %v321 = vpop.permute.xlu0 %320
        %v322 = vsel %vm254, %v319, 0
        %v324 = vsel %vm254, %v321, 0
        %326 = vmatpush.msra.mxu0 0.0
        %327 = vmatpush.msra.mxu0 0.0
        %328 = vmatpush.msra.mxu0 0.0
        %329 = vmatpush.msra.mxu0 0.0
        %330 = vmatpush.msra.mxu0 0.0
        %331 = vmatpush.msra.mxu0 0.0
        %332 = vmatpush.msra.mxu0 0.0
        %333 = vmatpush.msra.mxu0 0.0
        %334 = vmatpush.msra.mxu0 %v317
        %335 = vmatpush.msra.mxu0 %v316
        %336 = vmatpush.msra.mxu0 %v315
        %337 = vmatpush.msra.mxu0 %v314
        %338 = vmatpush.msra.mxu0 %v313
        %339 = vmatpush.msra.mxu0 %v312
        %340 = vmatpush.msra.mxu0 %v311
        %341 = vmatpush.msra.mxu0 %v310
        %342 = vmatmul.f32.gmra.mxu0 %v322
        %v343 = vpop.f32.mrf.mxu0
        %v344 = vadd.f32 0.0, %v343
        %345 = vmatmul.f32.gmra.mxu0 %v324
        %v346 = vpop.f32.mrf.mxu0
        %v347 = vadd.f32 0.0, %v346
        %348 = vdwg.mxu0
        %v349 = vadd.f32 %v304, %v344
        %v350 = vadd.f32 %v307, %v347
        %v351 = vld [vmem:[%s228 + $0x1] sm:$0xff]
        %v352 = vld [vmem:[%s228 + $0x9] sm:$0xff]
        %s353 = scalar_lea.vmem [#allocation2], 192
        %v354 = vld [vmem:[%s353] sm:$0xff]
        %v355 = vld [vmem:[%s353 + $0x8] sm:$0xff]
        %v356 = vld [vmem:[%s353 + $0x10] sm:$0xff]
        %v357 = vld [vmem:[%s353 + $0x18] sm:$0xff]
        %v358 = vld [vmem:[%s353 + $0x20] sm:$0xff]
        %v359 = vld [vmem:[%s353 + $0x28] sm:$0xff]
        %v360 = vld [vmem:[%s353 + $0x30] sm:$0xff]
        %v361 = vld [vmem:[%s353 + $0x38] sm:$0xff]
        %v363 = vsel %vm254, %v351, 0
        %v366 = vsel %vm254, %v352, 0
        %368 = vmatpush.msra.mxu0 0.0
        %369 = vmatpush.msra.mxu0 0.0
        %370 = vmatpush.msra.mxu0 0.0
        %371 = vmatpush.msra.mxu0 0.0
        %372 = vmatpush.msra.mxu0 0.0
        %373 = vmatpush.msra.mxu0 0.0
        %374 = vmatpush.msra.mxu0 0.0
        %375 = vmatpush.msra.mxu0 0.0
        %376 = vmatpush.msra.mxu0 %v361
        %377 = vmatpush.msra.mxu0 %v360
        %378 = vmatpush.msra.mxu0 %v359
        %379 = vmatpush.msra.mxu0 %v358
        %380 = vmatpush.msra.mxu0 %v357
        %381 = vmatpush.msra.mxu0 %v356
        %382 = vmatpush.msra.mxu0 %v355
        %383 = vmatpush.msra.mxu0 %v354
        %384 = vmatmul.f32.gmra.mxu0 %v363
        %v385 = vpop.f32.mrf.mxu0
        %v386 = vadd.f32 0.0, %v385
        %387 = vmatmul.f32.gmra.mxu0 %v366
        %v388 = vpop.f32.mrf.mxu0
        %v389 = vadd.f32 0.0, %v388
        %390 = vdwg.mxu0
        %v391 = vadd.f32 %v349, %v386
        %v392 = vadd.f32 %v350, %v389
        %s393 = scalar_lea.vmem [#allocation2], 256
        %v394 = vld [vmem:[%s393] sm:$0xff]
        %v395 = vld [vmem:[%s393 + $0x8] sm:$0xff]
        %v396 = vld [vmem:[%s393 + $0x10] sm:$0xff]
        %v397 = vld [vmem:[%s393 + $0x18] sm:$0xff]
        %v398 = vld [vmem:[%s393 + $0x20] sm:$0xff]
        %v399 = vld [vmem:[%s393 + $0x28] sm:$0xff]
        %v400 = vld [vmem:[%s393 + $0x30] sm:$0xff]
        %v401 = vld [vmem:[%s393 + $0x38] sm:$0xff]
        %402 = vrot.lane.b32.xlu0 %v351, 124
        %v403 = vpop.permute.xlu0 %402
        %404 = vrot.lane.b32.xlu0 %v352, 124
        %v405 = vpop.permute.xlu0 %404
        %v406 = vsel %vm254, %v403, 0
        %v408 = vsel %vm254, %v405, 0
        %410 = vmatpush.msra.mxu0 0.0
        %411 = vmatpush.msra.mxu0 0.0
        %412 = vmatpush.msra.mxu0 0.0
        %413 = vmatpush.msra.mxu0 0.0
        %414 = vmatpush.msra.mxu0 0.0
        %415 = vmatpush.msra.mxu0 0.0
        %416 = vmatpush.msra.mxu0 0.0
        %417 = vmatpush.msra.mxu0 0.0
        %418 = vmatpush.msra.mxu0 %v401
        %419 = vmatpush.msra.mxu0 %v400
        %420 = vmatpush.msra.mxu0 %v399
        %421 = vmatpush.msra.mxu0 %v398
        %422 = vmatpush.msra.mxu0 %v397
        %423 = vmatpush.msra.mxu0 %v396
        %424 = vmatpush.msra.mxu0 %v395
        %425 = vmatpush.msra.mxu0 %v394
        %426 = vmatmul.f32.gmra.mxu0 %v406
        %v427 = vpop.f32.mrf.mxu0
        %v428 = vadd.f32 0.0, %v427
        %429 = vmatmul.f32.gmra.mxu0 %v408
        %v430 = vpop.f32.mrf.mxu0
        %v431 = vadd.f32 0.0, %v430
        %432 = vdwg.mxu0
        %v433 = vadd.f32 %v391, %v428
        %v434 = vadd.f32 %v392, %v431
        %s435 = scalar_lea.vmem [#allocation2], 320
        %v436 = vld [vmem:[%s435] sm:$0xff]
        %v437 = vld [vmem:[%s435 + $0x8] sm:$0xff]
        %v438 = vld [vmem:[%s435 + $0x10] sm:$0xff]
        %v439 = vld [vmem:[%s435 + $0x18] sm:$0xff]
        %v440 = vld [vmem:[%s435 + $0x20] sm:$0xff]
        %v441 = vld [vmem:[%s435 + $0x28] sm:$0xff]
        %v442 = vld [vmem:[%s435 + $0x30] sm:$0xff]
        %v443 = vld [vmem:[%s435 + $0x38] sm:$0xff]
        %444 = vrot.lane.b32.xlu0 %v351, 120
        %v445 = vpop.permute.xlu0 %444
        %446 = vrot.lane.b32.xlu0 %v352, 120
        %v447 = vpop.permute.xlu0 %446
        %v448 = vsel %vm254, %v445, 0
        %v450 = vsel %vm254, %v447, 0
        %452 = vmatpush.msra.mxu0 0.0
        %453 = vmatpush.msra.mxu0 0.0
        %454 = vmatpush.msra.mxu0 0.0
        %455 = vmatpush.msra.mxu0 0.0
        %456 = vmatpush.msra.mxu0 0.0
        %457 = vmatpush.msra.mxu0 0.0
        %458 = vmatpush.msra.mxu0 0.0
        %459 = vmatpush.msra.mxu0 0.0
        %460 = vmatpush.msra.mxu0 %v443
        %461 = vmatpush.msra.mxu0 %v442
        %462 = vmatpush.msra.mxu0 %v441
        %463 = vmatpush.msra.mxu0 %v440
        %464 = vmatpush.msra.mxu0 %v439
        %465 = vmatpush.msra.mxu0 %v438
        %466 = vmatpush.msra.mxu0 %v437
        %467 = vmatpush.msra.mxu0 %v436
        %468 = vmatmul.f32.gmra.mxu0 %v448
        %v469 = vpop.f32.mrf.mxu0
        %v470 = vadd.f32 0.0, %v469
        %471 = vmatmul.f32.gmra.mxu0 %v450
        %v472 = vpop.f32.mrf.mxu0
        %v473 = vadd.f32 0.0, %v472
        %474 = vdwg.mxu0
        %v475 = vadd.f32 %v433, %v470
        %v476 = vadd.f32 %v434, %v473
        %v477 = vld [vmem:[%s228 + $0x2] sm:$0xff]
        %v478 = vld [vmem:[%s228 + $0xa] sm:$0xff]
        %s479 = scalar_lea.vmem [#allocation2], 384
        %v480 = vld [vmem:[%s479] sm:$0xff]
        %v481 = vld [vmem:[%s479 + $0x8] sm:$0xff]
        %v482 = vld [vmem:[%s479 + $0x10] sm:$0xff]
        %v483 = vld [vmem:[%s479 + $0x18] sm:$0xff]
        %v484 = vld [vmem:[%s479 + $0x20] sm:$0xff]
        %v485 = vld [vmem:[%s479 + $0x28] sm:$0xff]
        %v486 = vld [vmem:[%s479 + $0x30] sm:$0xff]
        %v487 = vld [vmem:[%s479 + $0x38] sm:$0xff]
        %v489 = vsel %vm254, %v477, 0
        %v492 = vsel %vm254, %v478, 0
        %494 = vmatpush.msra.mxu0 0.0
        %495 = vmatpush.msra.mxu0 0.0
        %496 = vmatpush.msra.mxu0 0.0
        %497 = vmatpush.msra.mxu0 0.0
        %498 = vmatpush.msra.mxu0 0.0
        %499 = vmatpush.msra.mxu0 0.0
        %500 = vmatpush.msra.mxu0 0.0
        %501 = vmatpush.msra.mxu0 0.0
        %502 = vmatpush.msra.mxu0 %v487
        %503 = vmatpush.msra.mxu0 %v486
        %504 = vmatpush.msra.mxu0 %v485
        %505 = vmatpush.msra.mxu0 %v484
        %506 = vmatpush.msra.mxu0 %v483
        %507 = vmatpush.msra.mxu0 %v482
        %508 = vmatpush.msra.mxu0 %v481
        %509 = vmatpush.msra.mxu0 %v480
        %510 = vmatmul.f32.gmra.mxu0 %v489
        %v511 = vpop.f32.mrf.mxu0
        %v512 = vadd.f32 0.0, %v511
        %513 = vmatmul.f32.gmra.mxu0 %v492
        %v514 = vpop.f32.mrf.mxu0
        %v515 = vadd.f32 0.0, %v514
        %516 = vdwg.mxu0
        %v517 = vadd.f32 %v475, %v512
        %v518 = vadd.f32 %v476, %v515
        %s519 = scalar_lea.vmem [#allocation2], 448
        %v520 = vld [vmem:[%s519] sm:$0xff]
        %v521 = vld [vmem:[%s519 + $0x8] sm:$0xff]
        %v522 = vld [vmem:[%s519 + $0x10] sm:$0xff]
        %v523 = vld [vmem:[%s519 + $0x18] sm:$0xff]
        %v524 = vld [vmem:[%s519 + $0x20] sm:$0xff]
        %v525 = vld [vmem:[%s519 + $0x28] sm:$0xff]
        %v526 = vld [vmem:[%s519 + $0x30] sm:$0xff]
        %v527 = vld [vmem:[%s519 + $0x38] sm:$0xff]
        %528 = vrot.lane.b32.xlu0 %v477, 124
        %v529 = vpop.permute.xlu0 %528
        %530 = vrot.lane.b32.xlu0 %v478, 124
        %v531 = vpop.permute.xlu0 %530
        %v532 = vsel %vm254, %v529, 0
        %v534 = vsel %vm254, %v531, 0
        %536 = vmatpush.msra.mxu0 0.0
        %537 = vmatpush.msra.mxu0 0.0
        %538 = vmatpush.msra.mxu0 0.0
        %539 = vmatpush.msra.mxu0 0.0
        %540 = vmatpush.msra.mxu0 0.0
        %541 = vmatpush.msra.mxu0 0.0
        %542 = vmatpush.msra.mxu0 0.0
        %543 = vmatpush.msra.mxu0 0.0
        %544 = vmatpush.msra.mxu0 %v527
        %545 = vmatpush.msra.mxu0 %v526
        %546 = vmatpush.msra.mxu0 %v525
        %547 = vmatpush.msra.mxu0 %v524
        %548 = vmatpush.msra.mxu0 %v523
        %549 = vmatpush.msra.mxu0 %v522
        %550 = vmatpush.msra.mxu0 %v521
        %551 = vmatpush.msra.mxu0 %v520
        %552 = vmatmul.f32.gmra.mxu0 %v532
        %v553 = vpop.f32.mrf.mxu0
        %v554 = vadd.f32 0.0, %v553
        %555 = vmatmul.f32.gmra.mxu0 %v534
        %v556 = vpop.f32.mrf.mxu0
        %v557 = vadd.f32 0.0, %v556
        %558 = vdwg.mxu0
        %v559 = vadd.f32 %v517, %v554
        %v560 = vadd.f32 %v518, %v557
        %s561 = scalar_lea.vmem [#allocation2], 512
        %v562 = vld [vmem:[%s561] sm:$0xff]
        %v563 = vld [vmem:[%s561 + $0x8] sm:$0xff]
        %v564 = vld [vmem:[%s561 + $0x10] sm:$0xff]
        %v565 = vld [vmem:[%s561 + $0x18] sm:$0xff]
        %v566 = vld [vmem:[%s561 + $0x20] sm:$0xff]
        %v567 = vld [vmem:[%s561 + $0x28] sm:$0xff]
        %v568 = vld [vmem:[%s561 + $0x30] sm:$0xff]
        %v569 = vld [vmem:[%s561 + $0x38] sm:$0xff]
        %570 = vrot.lane.b32.xlu0 %v477, 120
        %v571 = vpop.permute.xlu0 %570
        %572 = vrot.lane.b32.xlu0 %v478, 120
        %v573 = vpop.permute.xlu0 %572
        %v574 = vsel %vm254, %v571, 0
        %v576 = vsel %vm254, %v573, 0
        %578 = vmatpush.msra.mxu0 0.0
        %579 = vmatpush.msra.mxu0 0.0
        %580 = vmatpush.msra.mxu0 0.0
        %581 = vmatpush.msra.mxu0 0.0
        %582 = vmatpush.msra.mxu0 0.0
        %583 = vmatpush.msra.mxu0 0.0
        %584 = vmatpush.msra.mxu0 0.0
        %585 = vmatpush.msra.mxu0 0.0
        %586 = vmatpush.msra.mxu0 %v569
        %587 = vmatpush.msra.mxu0 %v568
        %588 = vmatpush.msra.mxu0 %v567
        %589 = vmatpush.msra.mxu0 %v566
        %590 = vmatpush.msra.mxu0 %v565
        %591 = vmatpush.msra.mxu0 %v564
        %592 = vmatpush.msra.mxu0 %v563
        %593 = vmatpush.msra.mxu0 %v562
        %594 = vmatmul.f32.gmra.mxu0 %v574
        %v595 = vpop.f32.mrf.mxu0
        %v596 = vadd.f32 0.0, %v595
        %597 = vmatmul.f32.gmra.mxu0 %v576
        %v598 = vpop.f32.mrf.mxu0
        %v599 = vadd.f32 0.0, %v598
        %600 = vdwg.mxu0
        %v601 = vadd.f32 %v559, %v596
        %v602 = vadd.f32 %v560, %v599
        %v603 = vadd.f32 %v601, %v602
        %v604 = vrot.slane %v603, 4
        %v605 = vadd.f32 %v603, %v604
        %v606 = vrot.slane %v605, 2
        %v607 = vadd.f32 %v605, %v606
        %v608 = vrot.slane %v607, 1
        %v609 = vadd.f32 %v607, %v608
        %610 = vst [vmem:[%s217] sm:$0x1] %v609
        %v611 = vmul.f32 %v601, %v601
        %v612 = vmul.f32 %v602, %v602
        %v613 = vadd.f32 %v611, %v612
        %v614 = vrot.slane %v613, 4
        %v615 = vadd.f32 %v613, %v614
        %v616 = vrot.slane %v615, 2
        %v617 = vadd.f32 %v615, %v616
        %v618 = vrot.slane %v617, 1
        %v619 = vadd.f32 %v617, %v618
        %620 = vst [vmem:[%s223] sm:$0x1] %v619
        %621 = vst [vmem:[%s211] sm:$0xff] %v601
        %622 = vst [vmem:[%s211 + $0x8] sm:$0xff] %v602
        %s623 = sand.u32 %s78, 1
        %s624 = scalar_lea.sflag [#allocation4], %s623
        %s625 = sand.u32 %s78, 1
        %s626 = smul.addr %s625, 16
        %s627 = scalar_lea.vmem [#allocation5], %s626
        %s628 = sand.u32 %s23, 1
        %s629 = scalar_lea.sflag [#allocation7], %s628
        %s630 = sand.u32 %s104, 1
        %s631 = scalar_lea.vmem [#allocation6], %s630
        %s632 = sand.u32 %s23, 1
        %s633 = scalar_lea.sflag [#allocation7], %s632
        %s634 = sand.u32 %s130, 1
        %s635 = scalar_lea.vmem [#allocation8], %s634
        // Predicated region
        $region33: #{tpu_custom_call.1} parent=27 // pred_check
          %p636 = pneg %p88
        $region34: #{tpu_custom_call.1} parent=27 // pred_check_branch
          %638 = sbr.rel (%p636) target = $region36
        $region35: #{tpu_custom_call.1} parent=27 // pred_region
          %640 = vsyncadd %s624, 0
          %s641 = smul.addr %s23, 2
          %s642 = smul.addr %s641, 8
          %s643 = scalar_lea.hbm %s2, %s642
          %s644 = sshll.u32 %s627, 4
          %s645 = int_to_ptr.vmem [resolvable:$true] %s644
          %s646 = sshll.u32 %s643, 4
          %s647 = int_to_ptr.hbm [resolvable:$true] %s646
          %652 = dma.vmem_to_hbm [thread:$0]  %s645, 256, %s647, %s624, 128, 128, 8
        $region36: #{tpu_custom_call.1} parent=27 // pred_fallthru
          _
        // Predicated region
        $region37: #{tpu_custom_call.1} parent=27 // pred_check
          %p653 = pneg %p114
        $region38: #{tpu_custom_call.1} parent=27 // pred_check_branch
          %655 = sbr.rel (%p653) target = $region40
        $region39: #{tpu_custom_call.1} parent=27 // pred_region
          %657 = vsyncadd %s629, 0
          %s658 = scalar_lea.hbm %s3, %s23
          %s660 = sshll.u32 %s631, 4
          %s661 = int_to_ptr.vmem [resolvable:$true] %s660
          %s662 = sshll.u32 %s658, 4
          %s663 = int_to_ptr.hbm [resolvable:$true] %s662
          %665 = dma.vmem_to_hbm [thread:$0]  %s661, 16, %s663, %s629
        $region40: #{tpu_custom_call.1} parent=27 // pred_fallthru
          _
        // Predicated region
        $region41: #{tpu_custom_call.1} parent=27 // pred_check
          %p666 = pneg %p140
        $region42: #{tpu_custom_call.1} parent=27 // pred_check_branch
          %668 = sbr.rel (%p666) target = $region44
        $region43: #{tpu_custom_call.1} parent=27 // pred_region
          %670 = vsyncadd %s633, 0
          %s671 = scalar_lea.hbm %s4, %s23
          %s673 = sshll.u32 %s635, 4
          %s674 = int_to_ptr.vmem [resolvable:$true] %s673
          %s675 = sshll.u32 %s671, 4
          %s676 = int_to_ptr.hbm [resolvable:$true] %s675
          %678 = dma.vmem_to_hbm [thread:$0]  %s674, 16, %s676, %s633
        $region44: #{tpu_custom_call.1} parent=27 // pred_fallthru
          _
      $region28: #{tpu_custom_call.1} parent=5 // pred_fallthru
        _
      %p679 = scmp.le.s32.totalorder 2, %s18
      // Predicated region
      $region45: #{tpu_custom_call.1} parent=5 // pred_check
        %p680 = pneg %p679
      $region46: #{tpu_custom_call.1} parent=5 // pred_check_branch
        %682 = sbr.rel (%p680) target = $region48
      $region47: #{tpu_custom_call.1} parent=5 // pred_region
        %s683 = ssub.s32 %s18, 2
        // Predicated region
        $region49: #{tpu_custom_call.1} parent=47 // pred_check
          %p684 = pneg %p94
        $region50: #{tpu_custom_call.1} parent=47 // pred_check_branch
          %686 = sbr.rel (%p684) target = $region52
        $region51: #{tpu_custom_call.1} parent=47 // pred_region
          %s687 = sand.u32 %s79, 1
          %s688 = scalar_lea.sflag [#allocation4], %s687
          %s689 = sand.u32 %s79, 1
          %s690 = smul.addr %s689, 16
          %s691 = scalar_lea.vmem [#allocation5], %s690
          %693 = dma.done %s688, 256
        $region52: #{tpu_custom_call.1} parent=47 // pred_fallthru
          _
        // Predicated region
        $region53: #{tpu_custom_call.1} parent=47 // pred_check
          %p694 = pneg %p120
        $region54: #{tpu_custom_call.1} parent=47 // pred_check_branch
          %696 = sbr.rel (%p694) target = $region56
        $region55: #{tpu_custom_call.1} parent=47 // pred_region
          %s697 = sand.u32 %s24, 1
          %s698 = scalar_lea.sflag [#allocation7], %s697
          %s699 = sand.u32 %s105, 1
          %s700 = scalar_lea.vmem [#allocation6], %s699
          %702 = dma.done %s698, 16
        $region56: #{tpu_custom_call.1} parent=47 // pred_fallthru
          _
        // Predicated region
        $region57: #{tpu_custom_call.1} parent=47 // pred_check
          %p703 = pneg %p146
        $region58: #{tpu_custom_call.1} parent=47 // pred_check_branch
          %705 = sbr.rel (%p703) target = $region60
        $region59: #{tpu_custom_call.1} parent=47 // pred_region
          %s706 = sand.u32 %s24, 1
          %s707 = scalar_lea.sflag [#allocation7], %s706
          %s708 = sand.u32 %s131, 1
          %s709 = scalar_lea.vmem [#allocation8], %s708
          %711 = dma.done %s707, 16
        $region60: #{tpu_custom_call.1} parent=47 // pred_fallthru
          _
      $region48: #{tpu_custom_call.1} parent=5 // pred_fallthru
        _
    $region6: #{tpu_custom_call.1} parent=1 // loop_footer
      %s22 = sadd.s32 1, %s18
    $region7: #{tpu_custom_call.1} parent=1 // loop_footer_branch
      %17 = sbr.rel target = $region3
    $region8: #{tpu_custom_call.1} parent=1 // loop_exit
      _
    %712 = vsyncpa [#allocation3], 1
    %s713 = scalar_lea.sflag [#allocation3], 1
    %714 = vsyncpa %s713, 1
    %715 = vsyncpa [#allocation4], 1
    %s716 = scalar_lea.sflag [#allocation4], 1
    %717 = vsyncpa %s716, 1
    %718 = vsyncpa [#allocation7], 1
    %s719 = scalar_lea.sflag [#allocation7], 1
    %720 = vsyncpa %s719, 1

</llo_original>
